<compile_context>
chip_gen: v7x
topology: tpu7x:2x2x1
jax: 0.10.0
libtpu: 0.0.40
codegen_flags: <defaults>
</compile_context>

<pallas_src>
import functools

import jax
import jax.numpy as jnp
from jax import lax
from jax.experimental import pallas as pl
from jax.experimental.pallas import tpu as pltpu


def _conv1x1(w, x_slab, bias):
    """1x1 conv over a lane-dense slab: (Co,Ci) @ (Ci,N) + (Co,1).

    Uses the MXU for realistic channel counts; for tiny toy channel counts
    (Cs < 8) falls back to broadcasted VPU FMAs over the whole slab.
    """
    Co, Ci = w.shape
    N = x_slab.shape[1]
    if min(Co, Ci) >= 8:
        return jnp.dot(w, x_slab, preferred_element_type=jnp.float32) + bias
    acc = jnp.zeros((Co, N), jnp.float32) + bias  # single hoisted bias broadcast
    for i in range(Ci):
        acc = acc + w[:, i:i + 1] * x_slab[i:i + 1, :]
    return acc


def _shuffle_unit_kernel(x_ref, w1_ref, b1_ref, dw_ref, db_ref, w2_ref,
                         b2_ref, sc_ref, out_ref, *, H, W):
    # x_ref / out_ref : (C, B*H*W) in VMEM (lane-dense flattened spatial axis)
    # w1_ref, w2_ref  : (Cs, Cs) in VMEM   (1x1 conv weights)
    # b1_ref, db_ref, b2_ref : (Cs, 1) in VMEM (biases, pre-reshaped)
    # dw_ref          : (Cs, 9) in VMEM    (depthwise 3x3 weights, flattened)
    # sc_ref          : (3,) in SMEM       [myscale=1.2**2, unit_scale, unit_bias]
    C, N = x_ref.shape
    Cs = C // 2
    f32 = jnp.float32

    x = x_ref[...]                      # (C, N)
    res = x[Cs:, :]                     # residual half of the channel split

    # ---- 1) Conv2d(Cs, Cs, 1) + bias, ReLU -----------------------------------
    y1 = jnp.maximum(_conv1x1(w1_ref[...], res, b1_ref[...]), 0.0)

    # ---- 2) depthwise Conv2d(Cs, Cs, 3, stride=1, padding=1, groups=Cs) ------
    # Shift-and-mask on the flattened lane axis: pltpu.roll (XLU) + boundary
    # masks built from a broadcasted iota.  No concatenate zero-padding.
    pos = lax.broadcasted_iota(jnp.int32, (Cs, N), 1)
    if (W & (W - 1)) == 0 and (H & (H - 1)) == 0:
        lw = W.bit_length() - 1
        w_idx = pos & (W - 1)
        h_idx = (pos >> lw) & (H - 1)
    else:
        # TODO(synk): general (non power-of-two) path uses vector int div/mod.
        w_idx = pos % W
        h_idx = (pos // W) % H

    dwk = dw_ref[...]                                   # (Cs, 9)
    acc = jnp.zeros((Cs, N), f32) + db_ref[...]         # hoisted bias broadcast
    for dh in (-1, 0, 1):
        for dv in (-1, 0, 1):
            k = (dh + 1) * 3 + (dv + 1)
            coef = dwk[:, k:k + 1]                      # (Cs, 1)
            s = dh * W + dv                             # flattened tap offset
            tap = y1 if s == 0 else pltpu.roll(y1, (-s) % N, 1)
            mask = None
            if dh == -1:
                mask = h_idx >= 1
            elif dh == 1:
                mask = h_idx <= H - 2
            if dv == -1:
                m = w_idx >= 1
                mask = m if mask is None else mask & m
            elif dv == 1:
                m = w_idx <= W - 2
                mask = m if mask is None else mask & m
            if mask is not None:
                tap = jnp.where(mask, tap, 0.0)
            acc = acc + coef * tap

    # ---- 3) Conv2d(Cs, Cs, 1) + bias, MyScale(1.2**2), ReLU,
    #          then  * self.scale + self.bias ----------------------------------
    my_scale = sc_ref[0]
    unit_scale = sc_ref[1]
    unit_bias = sc_ref[2]
    y3 = _conv1x1(w2_ref[...], acc, b2_ref[...])
    y3 = jnp.maximum(y3 * my_scale, 0.0) * unit_scale + unit_bias

    # ---- 4) concat([shortcut, residual], dim=C) + channel_shuffle(groups=2) --
    # out[2*i] = shortcut[i] = x[i], out[2*i+1] = residual[i]; built as one
    # interleaved slab and written with a single lane-dense store.
    pieces = []
    for i in range(Cs):
        pieces.append(x[i:i + 1, :])
        pieces.append(y3[i:i + 1, :])
    out_ref[...] = jnp.concatenate(pieces, axis=0)


@jax.jit
def shuffle_unit_forward(x, w1, b1, dw, db, w2, b2, scales):
    B, C, H, W = x.shape
    Cs = C // 2
    N = B * H * W
    # Lane-dense layout plumbing: (B, C, H, W) -> (C, B*H*W); N is a multiple
    # of 128, so every vreg / store is fully utilized.
    x_flat = jnp.transpose(x, (1, 0, 2, 3)).reshape(C, N)

    vmem = pl.BlockSpec(memory_space=pltpu.MemorySpace.VMEM)
    smem = pl.BlockSpec(memory_space=pltpu.MemorySpace.SMEM)

    out_flat = pl.pallas_call(
        functools.partial(_shuffle_unit_kernel, H=H, W=W),
        out_shape=jax.ShapeDtypeStruct((C, N), jnp.float32),
        in_specs=[vmem,            # x (C, N)
                  vmem, vmem,      # w1 (Cs,Cs), b1 (Cs,1)
                  vmem, vmem,      # dw (Cs,9), db (Cs,1)
                  vmem, vmem,      # w2 (Cs,Cs), b2 (Cs,1)
                  smem],           # scales (3,)
        out_specs=vmem,
    )(x_flat, w1, b1.reshape(Cs, 1), dw, db.reshape(Cs, 1), w2,
      b2.reshape(Cs, 1), scales)

    return out_flat.reshape(C, B, H, W).transpose(1, 0, 2, 3)


def shuffle_unit_reference(x, w1, b1, dw, db, w2, b2, scales):
    """Pure-JAX reference for correctness checking (same math, no Pallas)."""
    B, C, H, W = x.shape
    Cs = C // 2
    shortcut = x[:, :Cs]
    res = x[:, Cs:]
    y = jnp.einsum("oi,bihw->bohw", w1, res) + b1[None, :, None, None]
    y = jnp.maximum(y, 0.0)
    dwk = dw.reshape(Cs, 3, 3)
    yp = jnp.pad(y, ((0, 0), (0, 0), (1, 1), (1, 1)))
    acc = jnp.zeros_like(y) + db[None, :, None, None]
    for ki in range(3):
        for kj in range(3):
            acc = acc + dwk[None, :, ki, kj, None, None] * yp[:, :, ki:ki + H, kj:kj + W]
    y = jnp.einsum("oi,bihw->bohw", w2, acc) + b2[None, :, None, None]
    y = jnp.maximum(y * scales[0], 0.0)
    y = y * scales[1] + scales[2]
    out = jnp.concatenate([shortcut, y], axis=1)
    out = out.reshape(B, 2, Cs, H, W).transpose(0, 2, 1, 3, 4).reshape(B, C, H, W)
    return out


if __name__ == "__main__":
    # ShuffleUnit(in_channels=4, out_channels=4, stride=1)
    B, C, H, W = 2, 4, 16, 16
    Cs = C // 2

    key = jax.random.PRNGKey(0)
    kx, k1, kb1, kdw, kdb, k2, kb2 = jax.random.split(key, 7)

    x = jax.random.normal(kx, (B, C, H, W), dtype=jnp.float32)

    # Deterministic synthetic parameters (shapes from the module __init__).
    w1 = 0.3 * jax.random.normal(k1, (Cs, Cs), dtype=jnp.float32)    # Conv2d(Cs,Cs,1)
    b1 = 0.1 * jax.random.normal(kb1, (Cs,), dtype=jnp.float32)
    dw = 0.3 * jax.random.normal(kdw, (Cs, 9), dtype=jnp.float32)    # depthwise 3x3
    db = 0.1 * jax.random.normal(kdb, (Cs,), dtype=jnp.float32)
    w2 = 0.3 * jax.random.normal(k2, (Cs, Cs), dtype=jnp.float32)    # Conv2d(Cs,Cs,1)
    b2 = 0.1 * jax.random.normal(kb2, (Cs,), dtype=jnp.float32)
    # [MyScaleLayer(1.2**2), self.scale (init 1.0), self.bias (init 0.0)]
    scales = jnp.array([1.2 ** 2, 1.0, 0.0], dtype=jnp.float32)

    out = shuffle_unit_forward(x, w1, b1, dw, db, w2, b2, scales)
    out = jax.block_until_ready(out)

    ref = shuffle_unit_reference(x, w1, b1, dw, db, w2, b2, scales)
    assert out.shape == (B, C, H, W)
    assert jnp.allclose(out, ref, atol=1e-5, rtol=1e-5), "mismatch vs reference"

    print("KERNEL_OK")
</pallas_src>

<mosaic_0001>
module attributes {stable_mosaic.version = 11 : i64} {
  func.func @_shuffle_unit_kernel(%arg0: memref<4x512xf32, #tpu.memory_space<vmem>>, %arg1: memref<2x2xf32, #tpu.memory_space<vmem>>, %arg2: memref<2x1xf32, #tpu.memory_space<vmem>>, %arg3: memref<2x9xf32, #tpu.memory_space<vmem>>, %arg4: memref<2x1xf32, #tpu.memory_space<vmem>>, %arg5: memref<2x2xf32, #tpu.memory_space<vmem>>, %arg6: memref<2x1xf32, #tpu.memory_space<vmem>>, %arg7: memref<3xf32, #tpu.memory_space<smem>>, %arg8: memref<4x512xf32, #tpu.memory_space<vmem>>) attributes {dimension_semantics = [], scalar_prefetch = 0 : i64, scratch_operands = 0 : i64, tpu.core_type = #tpu.core_type<tc>} {
    %c0 = arith.constant 0 : index
    %c0_0 = arith.constant 0 : index
    %0 = vector.load %arg0[%c0, %c0_0] : memref<4x512xf32, #tpu.memory_space<vmem>>, vector<4x512xf32>
    %1 = vector.extract_strided_slice %0 {offsets = [2, 0], sizes = [2, 512], strides = [1, 1]} : vector<4x512xf32> to vector<2x512xf32>
    %c0_1 = arith.constant 0 : index
    %c0_2 = arith.constant 0 : index
    %2 = vector.load %arg1[%c0_1, %c0_2] : memref<2x2xf32, #tpu.memory_space<vmem>>, vector<2x2xf32>
    %c0_3 = arith.constant 0 : index
    %c0_4 = arith.constant 0 : index
    %3 = vector.load %arg2[%c0_3, %c0_4] : memref<2x1xf32, #tpu.memory_space<vmem>>, vector<2x1xf32>
    %cst = arith.constant 0.000000e+00 : f32
    %4 = vector.broadcast %cst : f32 to vector<2x512xf32>
    %5 = vector.broadcast %3 : vector<2x1xf32> to vector<2x512xf32>
    %6 = arith.addf %4, %5 : vector<2x512xf32>
    %7 = vector.extract_strided_slice %2 {offsets = [0, 0], sizes = [2, 1], strides = [1, 1]} : vector<2x2xf32> to vector<2x1xf32>
    %8 = vector.extract_strided_slice %1 {offsets = [0, 0], sizes = [1, 512], strides = [1, 1]} : vector<2x512xf32> to vector<1x512xf32>
    %9 = vector.broadcast %7 : vector<2x1xf32> to vector<2x512xf32>
    %10 = vector.broadcast %8 : vector<1x512xf32> to vector<2x512xf32>
    %11 = arith.mulf %9, %10 : vector<2x512xf32>
    %12 = arith.addf %6, %11 : vector<2x512xf32>
    %13 = vector.extract_strided_slice %2 {offsets = [0, 1], sizes = [2, 1], strides = [1, 1]} : vector<2x2xf32> to vector<2x1xf32>
    %14 = vector.extract_strided_slice %1 {offsets = [1, 0], sizes = [1, 512], strides = [1, 1]} : vector<2x512xf32> to vector<1x512xf32>
    %15 = vector.broadcast %13 : vector<2x1xf32> to vector<2x512xf32>
    %16 = vector.broadcast %14 : vector<1x512xf32> to vector<2x512xf32>
    %17 = arith.mulf %15, %16 : vector<2x512xf32>
    %18 = arith.addf %12, %17 : vector<2x512xf32>
    %cst_5 = arith.constant 0.000000e+00 : f32
    %19 = vector.broadcast %cst_5 : f32 to vector<2x512xf32>
    %20 = arith.maximumf %18, %19 : vector<2x512xf32>
    %21 = tpu.iota {dimensions = array<i32: 1>} : vector<2x512xi32>
    %c15_i32 = arith.constant 15 : i32
    %22 = vector.broadcast %c15_i32 : i32 to vector<2x512xi32>
    %23 = arith.andi %21, %22 : vector<2x512xi32>
    %c4_i32 = arith.constant 4 : i32
    %24 = vector.broadcast %c4_i32 : i32 to vector<2x512xi32>
    %25 = arith.shrsi %21, %24 : vector<2x512xi32>
    %c15_i32_6 = arith.constant 15 : i32
    %26 = vector.broadcast %c15_i32_6 : i32 to vector<2x512xi32>
    %27 = arith.andi %25, %26 : vector<2x512xi32>
    %c0_7 = arith.constant 0 : index
    %c0_8 = arith.constant 0 : index
    %28 = vector.load %arg3[%c0_7, %c0_8] : memref<2x9xf32, #tpu.memory_space<vmem>>, vector<2x9xf32>
    %cst_9 = arith.constant 0.000000e+00 : f32
    %29 = vector.broadcast %cst_9 : f32 to vector<2x512xf32>
    %c0_10 = arith.constant 0 : index
    %c0_11 = arith.constant 0 : index
    %30 = vector.load %arg4[%c0_10, %c0_11] : memref<2x1xf32, #tpu.memory_space<vmem>>, vector<2x1xf32>
    %31 = vector.broadcast %30 : vector<2x1xf32> to vector<2x512xf32>
    %32 = arith.addf %29, %31 : vector<2x512xf32>
    %33 = vector.extract_strided_slice %28 {offsets = [0, 0], sizes = [2, 1], strides = [1, 1]} : vector<2x9xf32> to vector<2x1xf32>
    %c17_i32 = arith.constant 17 : i32
    %34 = tpu.dynamic_rotate %20 by %c17_i32 dim 1 : vector<2x512xf32>, i32 -> vector<2x512xf32>
    %c1_i32 = arith.constant 1 : i32
    %35 = vector.broadcast %c1_i32 : i32 to vector<2x512xi32>
    %36 = arith.cmpi sge, %27, %35 : vector<2x512xi32>
    %c1_i32_12 = arith.constant 1 : i32
    %37 = vector.broadcast %c1_i32_12 : i32 to vector<2x512xi32>
    %38 = arith.cmpi sge, %23, %37 : vector<2x512xi32>
    %39 = arith.andi %36, %38 : vector<2x512xi1>
    %cst_13 = arith.constant 0.000000e+00 : f32
    %40 = vector.broadcast %cst_13 : f32 to vector<2x512xf32>
    %41 = arith.select %39, %34, %40 : vector<2x512xi1>, vector<2x512xf32>
    %42 = vector.broadcast %33 : vector<2x1xf32> to vector<2x512xf32>
    %43 = arith.mulf %42, %41 : vector<2x512xf32>
    %44 = arith.addf %32, %43 : vector<2x512xf32>
    %45 = vector.extract_strided_slice %28 {offsets = [0, 1], sizes = [2, 1], strides = [1, 1]} : vector<2x9xf32> to vector<2x1xf32>
    %c16_i32 = arith.constant 16 : i32
    %46 = tpu.dynamic_rotate %20 by %c16_i32 dim 1 : vector<2x512xf32>, i32 -> vector<2x512xf32>
    %c1_i32_14 = arith.constant 1 : i32
    %47 = vector.broadcast %c1_i32_14 : i32 to vector<2x512xi32>
    %48 = arith.cmpi sge, %27, %47 : vector<2x512xi32>
    %cst_15 = arith.constant 0.000000e+00 : f32
    %49 = vector.broadcast %cst_15 : f32 to vector<2x512xf32>
    %50 = arith.select %48, %46, %49 : vector<2x512xi1>, vector<2x512xf32>
    %51 = vector.broadcast %45 : vector<2x1xf32> to vector<2x512xf32>
    %52 = arith.mulf %51, %50 : vector<2x512xf32>
    %53 = arith.addf %44, %52 : vector<2x512xf32>
    %54 = vector.extract_strided_slice %28 {offsets = [0, 2], sizes = [2, 1], strides = [1, 1]} : vector<2x9xf32> to vector<2x1xf32>
    %c15_i32_16 = arith.constant 15 : i32
    %55 = tpu.dynamic_rotate %20 by %c15_i32_16 dim 1 : vector<2x512xf32>, i32 -> vector<2x512xf32>
    %c1_i32_17 = arith.constant 1 : i32
    %56 = vector.broadcast %c1_i32_17 : i32 to vector<2x512xi32>
    %57 = arith.cmpi sge, %27, %56 : vector<2x512xi32>
    %c14_i32 = arith.constant 14 : i32
    %58 = vector.broadcast %c14_i32 : i32 to vector<2x512xi32>
    %59 = arith.cmpi sle, %23, %58 : vector<2x512xi32>
    %60 = arith.andi %57, %59 : vector<2x512xi1>
    %cst_18 = arith.constant 0.000000e+00 : f32
    %61 = vector.broadcast %cst_18 : f32 to vector<2x512xf32>
    %62 = arith.select %60, %55, %61 : vector<2x512xi1>, vector<2x512xf32>
    %63 = vector.broadcast %54 : vector<2x1xf32> to vector<2x512xf32>
    %64 = arith.mulf %63, %62 : vector<2x512xf32>
    %65 = arith.addf %53, %64 : vector<2x512xf32>
    %66 = vector.extract_strided_slice %28 {offsets = [0, 3], sizes = [2, 1], strides = [1, 1]} : vector<2x9xf32> to vector<2x1xf32>
    %c1_i32_19 = arith.constant 1 : i32
    %67 = tpu.dynamic_rotate %20 by %c1_i32_19 dim 1 : vector<2x512xf32>, i32 -> vector<2x512xf32>
    %c1_i32_20 = arith.constant 1 : i32
    %68 = vector.broadcast %c1_i32_20 : i32 to vector<2x512xi32>
    %69 = arith.cmpi sge, %23, %68 : vector<2x512xi32>
    %cst_21 = arith.constant 0.000000e+00 : f32
    %70 = vector.broadcast %cst_21 : f32 to vector<2x512xf32>
    %71 = arith.select %69, %67, %70 : vector<2x512xi1>, vector<2x512xf32>
    %72 = vector.broadcast %66 : vector<2x1xf32> to vector<2x512xf32>
    %73 = arith.mulf %72, %71 : vector<2x512xf32>
    %74 = arith.addf %65, %73 : vector<2x512xf32>
    %75 = vector.extract_strided_slice %28 {offsets = [0, 4], sizes = [2, 1], strides = [1, 1]} : vector<2x9xf32> to vector<2x1xf32>
    %76 = vector.broadcast %75 : vector<2x1xf32> to vector<2x512xf32>
    %77 = arith.mulf %76, %20 : vector<2x512xf32>
    %78 = arith.addf %74, %77 : vector<2x512xf32>
    %79 = vector.extract_strided_slice %28 {offsets = [0, 5], sizes = [2, 1], strides = [1, 1]} : vector<2x9xf32> to vector<2x1xf32>
    %c511_i32 = arith.constant 511 : i32
    %80 = tpu.dynamic_rotate %20 by %c511_i32 dim 1 : vector<2x512xf32>, i32 -> vector<2x512xf32>
    %c14_i32_22 = arith.constant 14 : i32
    %81 = vector.broadcast %c14_i32_22 : i32 to vector<2x512xi32>
    %82 = arith.cmpi sle, %23, %81 : vector<2x512xi32>
    %cst_23 = arith.constant 0.000000e+00 : f32
    %83 = vector.broadcast %cst_23 : f32 to vector<2x512xf32>
    %84 = arith.select %82, %80, %83 : vector<2x512xi1>, vector<2x512xf32>
    %85 = vector.broadcast %79 : vector<2x1xf32> to vector<2x512xf32>
    %86 = arith.mulf %85, %84 : vector<2x512xf32>
    %87 = arith.addf %78, %86 : vector<2x512xf32>
    %88 = vector.extract_strided_slice %28 {offsets = [0, 6], sizes = [2, 1], strides = [1, 1]} : vector<2x9xf32> to vector<2x1xf32>
    %c497_i32 = arith.constant 497 : i32
    %89 = tpu.dynamic_rotate %20 by %c497_i32 dim 1 : vector<2x512xf32>, i32 -> vector<2x512xf32>
    %c14_i32_24 = arith.constant 14 : i32
    %90 = vector.broadcast %c14_i32_24 : i32 to vector<2x512xi32>
    %91 = arith.cmpi sle, %27, %90 : vector<2x512xi32>
    %c1_i32_25 = arith.constant 1 : i32
    %92 = vector.broadcast %c1_i32_25 : i32 to vector<2x512xi32>
    %93 = arith.cmpi sge, %23, %92 : vector<2x512xi32>
    %94 = arith.andi %91, %93 : vector<2x512xi1>
    %cst_26 = arith.constant 0.000000e+00 : f32
    %95 = vector.broadcast %cst_26 : f32 to vector<2x512xf32>
    %96 = arith.select %94, %89, %95 : vector<2x512xi1>, vector<2x512xf32>
    %97 = vector.broadcast %88 : vector<2x1xf32> to vector<2x512xf32>
    %98 = arith.mulf %97, %96 : vector<2x512xf32>
    %99 = arith.addf %87, %98 : vector<2x512xf32>
    %100 = vector.extract_strided_slice %28 {offsets = [0, 7], sizes = [2, 1], strides = [1, 1]} : vector<2x9xf32> to vector<2x1xf32>
    %c496_i32 = arith.constant 496 : i32
    %101 = tpu.dynamic_rotate %20 by %c496_i32 dim 1 : vector<2x512xf32>, i32 -> vector<2x512xf32>
    %c14_i32_27 = arith.constant 14 : i32
    %102 = vector.broadcast %c14_i32_27 : i32 to vector<2x512xi32>
    %103 = arith.cmpi sle, %27, %102 : vector<2x512xi32>
    %cst_28 = arith.constant 0.000000e+00 : f32
    %104 = vector.broadcast %cst_28 : f32 to vector<2x512xf32>
    %105 = arith.select %103, %101, %104 : vector<2x512xi1>, vector<2x512xf32>
    %106 = vector.broadcast %100 : vector<2x1xf32> to vector<2x512xf32>
    %107 = arith.mulf %106, %105 : vector<2x512xf32>
    %108 = arith.addf %99, %107 : vector<2x512xf32>
    %109 = vector.extract_strided_slice %28 {offsets = [0, 8], sizes = [2, 1], strides = [1, 1]} : vector<2x9xf32> to vector<2x1xf32>
    %c495_i32 = arith.constant 495 : i32
    %110 = tpu.dynamic_rotate %20 by %c495_i32 dim 1 : vector<2x512xf32>, i32 -> vector<2x512xf32>
    %c14_i32_29 = arith.constant 14 : i32
    %111 = vector.broadcast %c14_i32_29 : i32 to vector<2x512xi32>
    %112 = arith.cmpi sle, %27, %111 : vector<2x512xi32>
    %c14_i32_30 = arith.constant 14 : i32
    %113 = vector.broadcast %c14_i32_30 : i32 to vector<2x512xi32>
    %114 = arith.cmpi sle, %23, %113 : vector<2x512xi32>
    %115 = arith.andi %112, %114 : vector<2x512xi1>
    %cst_31 = arith.constant 0.000000e+00 : f32
    %116 = vector.broadcast %cst_31 : f32 to vector<2x512xf32>
    %117 = arith.select %115, %110, %116 : vector<2x512xi1>, vector<2x512xf32>
    %118 = vector.broadcast %109 : vector<2x1xf32> to vector<2x512xf32>
    %119 = arith.mulf %118, %117 : vector<2x512xf32>
    %120 = arith.addf %108, %119 : vector<2x512xf32>
    %c0_32 = arith.constant 0 : index
    %121 = memref.load %arg7[%c0_32] : memref<3xf32, #tpu.memory_space<smem>>
    %c1 = arith.constant 1 : index
    %122 = memref.load %arg7[%c1] : memref<3xf32, #tpu.memory_space<smem>>
    %c2 = arith.constant 2 : index
    %123 = memref.load %arg7[%c2] : memref<3xf32, #tpu.memory_space<smem>>
    %c0_33 = arith.constant 0 : index
    %c0_34 = arith.constant 0 : index
    %124 = vector.load %arg5[%c0_33, %c0_34] : memref<2x2xf32, #tpu.memory_space<vmem>>, vector<2x2xf32>
    %c0_35 = arith.constant 0 : index
    %c0_36 = arith.constant 0 : index
    %125 = vector.load %arg6[%c0_35, %c0_36] : memref<2x1xf32, #tpu.memory_space<vmem>>, vector<2x1xf32>
    %cst_37 = arith.constant 0.000000e+00 : f32
    %126 = vector.broadcast %cst_37 : f32 to vector<2x512xf32>
    %127 = vector.broadcast %125 : vector<2x1xf32> to vector<2x512xf32>
    %128 = arith.addf %126, %127 : vector<2x512xf32>
    %129 = vector.extract_strided_slice %124 {offsets = [0, 0], sizes = [2, 1], strides = [1, 1]} : vector<2x2xf32> to vector<2x1xf32>
    %130 = vector.extract_strided_slice %120 {offsets = [0, 0], sizes = [1, 512], strides = [1, 1]} : vector<2x512xf32> to vector<1x512xf32>
    %131 = vector.broadcast %129 : vector<2x1xf32> to vector<2x512xf32>
    %132 = vector.broadcast %130 : vector<1x512xf32> to vector<2x512xf32>
    %133 = arith.mulf %131, %132 : vector<2x512xf32>
    %134 = arith.addf %128, %133 : vector<2x512xf32>
    %135 = vector.extract_strided_slice %124 {offsets = [0, 1], sizes = [2, 1], strides = [1, 1]} : vector<2x2xf32> to vector<2x1xf32>
    %136 = vector.extract_strided_slice %120 {offsets = [1, 0], sizes = [1, 512], strides = [1, 1]} : vector<2x512xf32> to vector<1x512xf32>
    %137 = vector.broadcast %135 : vector<2x1xf32> to vector<2x512xf32>
    %138 = vector.broadcast %136 : vector<1x512xf32> to vector<2x512xf32>
    %139 = arith.mulf %137, %138 : vector<2x512xf32>
    %140 = arith.addf %134, %139 : vector<2x512xf32>
    %141 = vector.broadcast %121 : f32 to vector<2x512xf32>
    %142 = arith.mulf %140, %141 : vector<2x512xf32>
    %cst_38 = arith.constant 0.000000e+00 : f32
    %143 = vector.broadcast %cst_38 : f32 to vector<2x512xf32>
    %144 = arith.maximumf %142, %143 : vector<2x512xf32>
    %145 = vector.broadcast %122 : f32 to vector<2x512xf32>
    %146 = arith.mulf %144, %145 : vector<2x512xf32>
    %147 = vector.broadcast %123 : f32 to vector<2x512xf32>
    %148 = arith.addf %146, %147 : vector<2x512xf32>
    %149 = vector.extract_strided_slice %0 {offsets = [0, 0], sizes = [1, 512], strides = [1, 1]} : vector<4x512xf32> to vector<1x512xf32>
    %150 = vector.extract_strided_slice %148 {offsets = [0, 0], sizes = [1, 512], strides = [1, 1]} : vector<2x512xf32> to vector<1x512xf32>
    %151 = vector.extract_strided_slice %0 {offsets = [1, 0], sizes = [1, 512], strides = [1, 1]} : vector<4x512xf32> to vector<1x512xf32>
    %152 = vector.extract_strided_slice %148 {offsets = [1, 0], sizes = [1, 512], strides = [1, 1]} : vector<2x512xf32> to vector<1x512xf32>
    %153 = tpu.concatenate %149, %150, %151, %152 in 0 : vector<1x512xf32>, vector<1x512xf32>, vector<1x512xf32>, vector<1x512xf32> -> vector<4x512xf32>
    %c0_39 = arith.constant 0 : index
    %c0_40 = arith.constant 0 : index
    %154 = vector.load %arg8[%c0_39, %c0_40] : memref<4x512xf32, #tpu.memory_space<vmem>>, vector<4x512xf32>
    tpu.vector_store %arg8[%c0_39, %c0_40], %153 {strides = array<i32>} : memref<4x512xf32, #tpu.memory_space<vmem>>, vector<4x512xf32>,
    return
  }
}

</mosaic_0001>

<llo_original>
// kernel: shuffle_unit_forward.1
$region0: #{shuffle_unit_forward.1}
  #allocation0 [shape = 'u32[]', space=smem, size = 0x4, offset = 0x4, fixed_abs, tag = 'smem constant byte address 0x4 - core index']
  #allocation1 [shape = 'u32[144,128]{1,0:T(1,128)}', space=vmem, size = 0x12000, scoped, tag = 'internal scratch']
  %s0 = inlined_call_operand.vmem [shape: f32[4,512], index: 0, kind: input, shape index: {}]
  %s1 = inlined_call_operand.vmem [shape: f32[2,2], index: 1, kind: input, shape index: {}]
  %s2 = inlined_call_operand.vmem [shape: f32[2,1], index: 2, kind: input, shape index: {}]
  %s3 = inlined_call_operand.vmem [shape: f32[2,9], index: 3, kind: input, shape index: {}]
  %s4 = inlined_call_operand.vmem [shape: f32[2,1], index: 4, kind: input, shape index: {}]
  %s5 = inlined_call_operand.vmem [shape: f32[2,2], index: 5, kind: input, shape index: {}]
  %s6 = inlined_call_operand.vmem [shape: f32[2,1], index: 6, kind: input, shape index: {}]
  %s7 = inlined_call_operand.vmem [shape: f32[3], index: 7, kind: input, shape index: {}]
  %s8 = inlined_call_operand.vmem [shape: f32[4,512], index: 8, kind: output, shape index: {}]
  %s9 = sld [smem:[#allocation0]]
  $region46: #{shuffle_unit_forward.1} parent=0
    _
  %s11 = ssub.s32 1, %s9
  %s12 = scalar_select 0, %s11, %s9
  $region1: #{shuffle_unit_forward.1} parent=0
    #allocation2 [shape = 'u8[512]{0}', space=smem, size = 0x200, scoped, tag = 'input window, operand 7, single buffered']
    #allocation3 [shape = 's32[1]{0}', space=sflag, size = 0x4, scoped, tag = 'scoped memory for shuffle_unit_forward.1']
    %13 = vsyncpa [#allocation3], 0
    // Predicated region
    $region2: #{shuffle_unit_forward.1} parent=1 // pred_check
      _
    $region3: #{shuffle_unit_forward.1} parent=1 // pred_check_branch
      %15 = sbr.rel (0) target = $region5
    $region4: #{shuffle_unit_forward.1} parent=1 // pred_region
      _
    $region5: #{shuffle_unit_forward.1} parent=1 // pred_fallthru
      _
    // Predicated region
    $region6: #{shuffle_unit_forward.1} parent=1 // pred_check
      _
    $region7: #{shuffle_unit_forward.1} parent=1 // pred_check_branch
      %17 = sbr.rel (0) target = $region9
    $region8: #{shuffle_unit_forward.1} parent=1 // pred_region
      _
    $region9: #{shuffle_unit_forward.1} parent=1 // pred_fallthru
      _
    // Predicated region
    $region10: #{shuffle_unit_forward.1} parent=1 // pred_check
      _
    $region11: #{shuffle_unit_forward.1} parent=1 // pred_check_branch
      %19 = sbr.rel (0) target = $region13
    $region12: #{shuffle_unit_forward.1} parent=1 // pred_region
      _
    $region13: #{shuffle_unit_forward.1} parent=1 // pred_fallthru
      _
    // Predicated region
    $region14: #{shuffle_unit_forward.1} parent=1 // pred_check
      _
    $region15: #{shuffle_unit_forward.1} parent=1 // pred_check_branch
      %21 = sbr.rel (0) target = $region17
    $region16: #{shuffle_unit_forward.1} parent=1 // pred_region
      _
    $region17: #{shuffle_unit_forward.1} parent=1 // pred_fallthru
      _
    // Predicated region
    $region18: #{shuffle_unit_forward.1} parent=1 // pred_check
      _
    $region19: #{shuffle_unit_forward.1} parent=1 // pred_check_branch
      %23 = sbr.rel (0) target = $region21
    $region20: #{shuffle_unit_forward.1} parent=1 // pred_region
      _
    $region21: #{shuffle_unit_forward.1} parent=1 // pred_fallthru
      _
    // Predicated region
    $region22: #{shuffle_unit_forward.1} parent=1 // pred_check
      _
    $region23: #{shuffle_unit_forward.1} parent=1 // pred_check_branch
      %25 = sbr.rel (0) target = $region25
    $region24: #{shuffle_unit_forward.1} parent=1 // pred_region
      _
    $region25: #{shuffle_unit_forward.1} parent=1 // pred_fallthru
      _
    // Predicated region
    $region26: #{shuffle_unit_forward.1} parent=1 // pred_check
      _
    $region27: #{shuffle_unit_forward.1} parent=1 // pred_check_branch
      %27 = sbr.rel (0) target = $region29
    $region28: #{shuffle_unit_forward.1} parent=1 // pred_region
      _
    $region29: #{shuffle_unit_forward.1} parent=1 // pred_fallthru
      _
    // Predicated region
    $region30: #{shuffle_unit_forward.1} parent=1 // pred_check
      _
    $region31: #{shuffle_unit_forward.1} parent=1 // pred_check_branch
      %29 = sbr.rel (0) target = $region33
    $region32: #{shuffle_unit_forward.1} parent=1 // pred_region
      %s31 = ssub.s32 16, 16
      %32 = vsyncadd [#allocation3], %s31
      %s34 = sshll.u32 %s7, 4
      %s35 = int_to_ptr.vmem [resolvable:$true] %s34
      %37 = dma.vmem_to_smem %s35, 16, [#allocation2], [#allocation3]
    $region33: #{shuffle_unit_forward.1} parent=1 // pred_fallthru
      _
    // Predicated region
    $region34: #{shuffle_unit_forward.1} parent=1 // pred_check
      _
    $region35: #{shuffle_unit_forward.1} parent=1 // pred_check_branch
      %39 = sbr.rel (0) target = $region37
    $region36: #{shuffle_unit_forward.1} parent=1 // pred_region
      %40 = dma.done [#allocation3], 16
    $region37: #{shuffle_unit_forward.1} parent=1 // pred_fallthru
      _
    %41 = sfence
    %v42 = vld [vmem:[%s0] sm:$0xff]
    %v43 = vld [vmem:[%s0 + $0x8] sm:$0xff]
    %v44 = vld [vmem:[%s1] sm:$0x3]
    %v45 = vld [vmem:[%s2] sm:$0x3]
    %47 = vset.pattern.permute.xlu0 0
    %48 = vperm.xlu0 %47, %v45
    %v49 = vpop.permute.xlu0 %48
    %v51 = vadd.f32 %v49, 0.0
    %53 = vset.pattern.permute.xlu0 0
    %54 = vperm.xlu0 %53, %v44
    %v55 = vpop.permute.xlu0 %54
    %v59 = vlaneseq
    %v60 = vshrl.u32 %v59, 7
    %v61 = vsub.s32 2, %v60
    %v62 = vrot.slane %v42, %v61
    %v63 = vlaneseq
    %v64 = vshrl.u32 %v63, 7
    %v65 = vsub.s32 6, %v64
    %v66 = vrot.slane %v42, %v65
    %v67 = vlaneseq
    %v68 = vshrl.u32 %v67, 7
    %v69 = vsub.s32 2, %v68
    %v70 = vrot.slane %v43, %v69
    %v71 = vlaneseq
    %v72 = vshrl.u32 %v71, 7
    %v73 = vsub.s32 6, %v72
    %v74 = vrot.slane %v43, %v73
    %v79 = vlaneseq
    %v80 = vshrl.u32 %v79, 7
    %v81 = vsub.s32 2, %v80
    %v82 = vrot.slane %v62, %v81
    %v83 = vlaneseq
    %v84 = vshrl.u32 %v83, 7
    %v85 = vsub.s32 2, %v84
    %v86 = vrot.slane %v66, %v85
    %v87 = vlaneseq
    %v88 = vshrl.u32 %v87, 7
    %v89 = vsub.s32 2, %v88
    %v90 = vrot.slane %v70, %v89
    %v91 = vlaneseq
    %v92 = vshrl.u32 %v91, 7
    %v93 = vsub.s32 2, %v92
    %v94 = vrot.slane %v74, %v93
    %v95 = vmul.f32 %v55, %v82
    %v96 = vmul.f32 %v55, %v86
    %v97 = vmul.f32 %v55, %v90
    %v98 = vmul.f32 %v55, %v94
    %v99 = vadd.f32 %v51, %v95
    %v100 = vadd.f32 %v51, %v96
    %v101 = vadd.f32 %v51, %v97
    %v102 = vadd.f32 %v51, %v98
    %103 = vset.pattern.permute.xlu0 1
    %104 = vperm.xlu0 %103, %v44
    %v105 = vpop.permute.xlu0 %104
    %v107 = vlaneseq
    %v108 = vshrl.u32 %v107, 7
    %v109 = vsub.s32 3, %v108
    %v110 = vrot.slane %v42, %v109
    %v111 = vlaneseq
    %v112 = vshrl.u32 %v111, 7
    %v113 = vsub.s32 7, %v112
    %v114 = vrot.slane %v42, %v113
    %v115 = vlaneseq
    %v116 = vshrl.u32 %v115, 7
    %v117 = vsub.s32 3, %v116
    %v118 = vrot.slane %v43, %v117
    %v119 = vlaneseq
    %v120 = vshrl.u32 %v119, 7
    %v121 = vsub.s32 7, %v120
    %v122 = vrot.slane %v43, %v121
    %v127 = vlaneseq
    %v128 = vshrl.u32 %v127, 7
    %v129 = vsub.s32 3, %v128
    %v130 = vrot.slane %v110, %v129
    %v131 = vlaneseq
    %v132 = vshrl.u32 %v131, 7
    %v133 = vsub.s32 3, %v132
    %v134 = vrot.slane %v114, %v133
    %v135 = vlaneseq
    %v136 = vshrl.u32 %v135, 7
    %v137 = vsub.s32 3, %v136
    %v138 = vrot.slane %v118, %v137
    %v139 = vlaneseq
    %v140 = vshrl.u32 %v139, 7
    %v141 = vsub.s32 3, %v140
    %v142 = vrot.slane %v122, %v141
    %v143 = vmul.f32 %v105, %v130
    %v144 = vmul.f32 %v105, %v134
    %v145 = vmul.f32 %v105, %v138
    %v146 = vmul.f32 %v105, %v142
    %v147 = vadd.f32 %v99, %v143
    %v148 = vadd.f32 %v100, %v144
    %v149 = vadd.f32 %v101, %v145
    %v150 = vadd.f32 %v102, %v146
    %v151 = vmax.f32 %v147, 0.0
    %v152 = vmax.f32 %v148, 0.0
    %v153 = vmax.f32 %v149, 0.0
    %v154 = vmax.f32 %v150, 0.0
    %v155 = vlaneseq
    %v156 = vand.u32 %v155, 127
    %v157 = vadd.s32 %v156, 128
    %v158 = vadd.s32 %v156, 256
    %v159 = vadd.s32 %v156, 384
    %v160 = vand.u32 %v156, 15
    %v161 = vand.u32 %v157, 15
    %v162 = vand.u32 %v158, 15
    %v163 = vand.u32 %v159, 15
    %v164 = vshra.s32 %v156, 4
    %v165 = vshra.s32 %v157, 4
    %v166 = vshra.s32 %v158, 4
    %v167 = vshra.s32 %v159, 4
    %v168 = vand.u32 %v164, 15
    %v169 = vand.u32 %v165, 15
    %v170 = vand.u32 %v166, 15
    %v171 = vand.u32 %v167, 15
    %v172 = vld [vmem:[%s3] sm:$0x3]
    %v173 = vld [vmem:[%s4] sm:$0x3]
    %175 = vset.pattern.permute.xlu0 0
    %176 = vperm.xlu0 %175, %v173
    %v177 = vpop.permute.xlu0 %176
    %v179 = vadd.f32 %v177, 0.0
    %180 = vrot.lane.b32.xlu0 %v151, 17
    %v181 = vpop.permute.xlu0 %180
    %182 = vrot.lane.b32.xlu0 %v152, 17
    %v183 = vpop.permute.xlu0 %182
    %184 = vrot.lane.b32.xlu0 %v153, 17
    %v185 = vpop.permute.xlu0 %184
    %186 = vrot.lane.b32.xlu0 %v154, 17
    %v187 = vpop.permute.xlu0 %186
    %vm188 = vcmp.lt.s32.totalorder %v156, 17
    %v189 = vsel %vm188, %v185, %v187
    %v190 = vsel %vm188, %v183, %v185
    %v191 = vsel %vm188, %v181, %v183
    %v192 = vsel %vm188, %v187, %v181
    %vm193 = vcmp.ge.s32.totalorder %v168, 1
    %vm194 = vcmp.ge.s32.totalorder %v169, 1
    %vm195 = vcmp.ge.s32.totalorder %v170, 1
    %vm196 = vcmp.ge.s32.totalorder %v171, 1
    %vm197 = vcmp.ge.s32.totalorder %v160, 1
    %vm198 = vcmp.ge.s32.totalorder %v161, 1
    %vm199 = vcmp.ge.s32.totalorder %v162, 1
    %vm200 = vcmp.ge.s32.totalorder %v163, 1
    %vm201 = vmand %vm193, %vm197
    %vm202 = vmand %vm194, %vm198
    %vm203 = vmand %vm195, %vm199
    %vm204 = vmand %vm196, %vm200
    %v205 = vsel %vm201, %v192, 0.0
    %v206 = vsel %vm202, %v191, 0.0
    %v207 = vsel %vm203, %v190, 0.0
    %v208 = vsel %vm204, %v189, 0.0
    %210 = vset.pattern.permute.xlu0 0
    %211 = vperm.xlu0 %210, %v172
    %v212 = vpop.permute.xlu0 %211
    %v214 = vmul.f32 %v212, %v205
    %v215 = vmul.f32 %v212, %v206
    %v216 = vmul.f32 %v212, %v207
    %v217 = vmul.f32 %v212, %v208
    %v218 = vadd.f32 %v179, %v214
    %v219 = vadd.f32 %v179, %v215
    %v220 = vadd.f32 %v179, %v216
    %v221 = vadd.f32 %v179, %v217
    %222 = vrot.lane.b32.xlu0 %v151, 16
    %v223 = vpop.permute.xlu0 %222
    %224 = vrot.lane.b32.xlu0 %v152, 16
    %v225 = vpop.permute.xlu0 %224
    %226 = vrot.lane.b32.xlu0 %v153, 16
    %v227 = vpop.permute.xlu0 %226
    %228 = vrot.lane.b32.xlu0 %v154, 16
    %v229 = vpop.permute.xlu0 %228
    %vm230 = vcmp.lt.s32.totalorder %v156, 16
    %v231 = vsel %vm230, %v227, %v229
    %v232 = vsel %vm230, %v225, %v227
    %v233 = vsel %vm230, %v223, %v225
    %v234 = vsel %vm230, %v229, %v223
    %v235 = vsel %vm193, %v234, 0.0
    %v236 = vsel %vm194, %v233, 0.0
    %v237 = vsel %vm195, %v232, 0.0
    %v238 = vsel %vm196, %v231, 0.0
    %239 = vset.pattern.permute.xlu0 1
    %240 = vperm.xlu0 %239, %v172
    %v241 = vpop.permute.xlu0 %240
    %v243 = vmul.f32 %v241, %v235
    %v244 = vmul.f32 %v241, %v236
    %v245 = vmul.f32 %v241, %v237
    %v246 = vmul.f32 %v241, %v238
    %v247 = vadd.f32 %v218, %v243
    %v248 = vadd.f32 %v219, %v244
    %v249 = vadd.f32 %v220, %v245
    %v250 = vadd.f32 %v221, %v246
    %251 = vrot.lane.b32.xlu0 %v151, 15
    %v252 = vpop.permute.xlu0 %251
    %253 = vrot.lane.b32.xlu0 %v152, 15
    %v254 = vpop.permute.xlu0 %253
    %255 = vrot.lane.b32.xlu0 %v153, 15
    %v256 = vpop.permute.xlu0 %255
    %257 = vrot.lane.b32.xlu0 %v154, 15
    %v258 = vpop.permute.xlu0 %257
    %vm259 = vcmp.lt.s32.totalorder %v156, 15
    %v260 = vsel %vm259, %v256, %v258
    %v261 = vsel %vm259, %v254, %v256
    %v262 = vsel %vm259, %v252, %v254
    %v263 = vsel %vm259, %v258, %v252
    %vm264 = vcmp.le.s32.totalorder %v160, 14
    %vm265 = vcmp.le.s32.totalorder %v161, 14
    %vm266 = vcmp.le.s32.totalorder %v162, 14
    %vm267 = vcmp.le.s32.totalorder %v163, 14
    %vm268 = vmand %vm193, %vm264
    %vm269 = vmand %vm194, %vm265
    %vm270 = vmand %vm195, %vm266
    %vm271 = vmand %vm196, %vm267
    %v272 = vsel %vm268, %v263, 0.0
    %v273 = vsel %vm269, %v262, 0.0
    %v274 = vsel %vm270, %v261, 0.0
    %v275 = vsel %vm271, %v260, 0.0
    %276 = vset.pattern.permute.xlu0 2
    %277 = vperm.xlu0 %276, %v172
    %v278 = vpop.permute.xlu0 %277
    %v280 = vmul.f32 %v278, %v272
    %v281 = vmul.f32 %v278, %v273
    %v282 = vmul.f32 %v278, %v274
    %v283 = vmul.f32 %v278, %v275
    %v284 = vadd.f32 %v247, %v280
    %v285 = vadd.f32 %v248, %v281
    %v286 = vadd.f32 %v249, %v282
    %v287 = vadd.f32 %v250, %v283
    %288 = vrot.lane.b32.xlu0 %v151, 1
    %v289 = vpop.permute.xlu0 %288
    %290 = vrot.lane.b32.xlu0 %v152, 1
    %v291 = vpop.permute.xlu0 %290
    %292 = vrot.lane.b32.xlu0 %v153, 1
    %v293 = vpop.permute.xlu0 %292
    %294 = vrot.lane.b32.xlu0 %v154, 1
    %v295 = vpop.permute.xlu0 %294
    %vm296 = vcmp.lt.s32.totalorder %v156, 1
    %v297 = vsel %vm296, %v293, %v295
    %v298 = vsel %vm296, %v291, %v293
    %v299 = vsel %vm296, %v289, %v291
    %v300 = vsel %vm296, %v295, %v289
    %v301 = vsel %vm197, %v300, 0.0
    %v302 = vsel %vm198, %v299, 0.0
    %v303 = vsel %vm199, %v298, 0.0
    %v304 = vsel %vm200, %v297, 0.0
    %305 = vset.pattern.permute.xlu0 3
    %306 = vperm.xlu0 %305, %v172
    %v307 = vpop.permute.xlu0 %306
    %v309 = vmul.f32 %v307, %v301
    %v310 = vmul.f32 %v307, %v302
    %v311 = vmul.f32 %v307, %v303
    %v312 = vmul.f32 %v307, %v304
    %v313 = vadd.f32 %v284, %v309
    %v314 = vadd.f32 %v285, %v310
    %v315 = vadd.f32 %v286, %v311
    %v316 = vadd.f32 %v287, %v312
    %317 = vset.pattern.permute.xlu0 4
    %318 = vperm.xlu0 %317, %v172
    %v319 = vpop.permute.xlu0 %318
    %v321 = vmul.f32 %v319, %v151
    %v322 = vmul.f32 %v319, %v152
    %v323 = vmul.f32 %v319, %v153
    %v324 = vmul.f32 %v319, %v154
    %v325 = vadd.f32 %v313, %v321
    %v326 = vadd.f32 %v314, %v322
    %v327 = vadd.f32 %v315, %v323
    %v328 = vadd.f32 %v316, %v324
    %329 = vrot.lane.b32.xlu0 %v151, 127
    %v330 = vpop.permute.xlu0 %329
    %331 = vrot.lane.b32.xlu0 %v152, 127
    %v332 = vpop.permute.xlu0 %331
    %333 = vrot.lane.b32.xlu0 %v153, 127
    %v334 = vpop.permute.xlu0 %333
    %335 = vrot.lane.b32.xlu0 %v154, 127
    %v336 = vpop.permute.xlu0 %335
    %vm337 = vcmp.lt.s32.totalorder %v156, 127
    %v338 = vsel %vm337, %v334, %v336
    %v339 = vsel %vm337, %v332, %v334
    %v340 = vsel %vm337, %v330, %v332
    %v341 = vsel %vm337, %v336, %v330
    %v342 = vsel %vm264, %v340, 0.0
    %v343 = vsel %vm265, %v339, 0.0
    %v344 = vsel %vm266, %v338, 0.0
    %v345 = vsel %vm267, %v341, 0.0
    %346 = vset.pattern.permute.xlu0 5
    %347 = vperm.xlu0 %346, %v172
    %v348 = vpop.permute.xlu0 %347
    %v350 = vmul.f32 %v348, %v342
    %v351 = vmul.f32 %v348, %v343
    %v352 = vmul.f32 %v348, %v344
    %v353 = vmul.f32 %v348, %v345
    %v354 = vadd.f32 %v325, %v350
    %v355 = vadd.f32 %v326, %v351
    %v356 = vadd.f32 %v327, %v352
    %v357 = vadd.f32 %v328, %v353
    %358 = vrot.lane.b32.xlu0 %v151, 113
    %v359 = vpop.permute.xlu0 %358
    %360 = vrot.lane.b32.xlu0 %v152, 113
    %v361 = vpop.permute.xlu0 %360
    %362 = vrot.lane.b32.xlu0 %v153, 113
    %v363 = vpop.permute.xlu0 %362
    %364 = vrot.lane.b32.xlu0 %v154, 113
    %v365 = vpop.permute.xlu0 %364
    %vm366 = vcmp.lt.s32.totalorder %v156, 113
    %v367 = vsel %vm366, %v363, %v365
    %v368 = vsel %vm366, %v361, %v363
    %v369 = vsel %vm366, %v359, %v361
    %v370 = vsel %vm366, %v365, %v359
    %vm371 = vcmp.le.s32.totalorder %v168, 14
    %vm372 = vcmp.le.s32.totalorder %v169, 14
    %vm373 = vcmp.le.s32.totalorder %v170, 14
    %vm374 = vcmp.le.s32.totalorder %v171, 14
    %vm375 = vmand %vm371, %vm197
    %vm376 = vmand %vm372, %vm198
    %vm377 = vmand %vm373, %vm199
    %vm378 = vmand %vm374, %vm200
    %v379 = vsel %vm375, %v369, 0.0
    %v380 = vsel %vm376, %v368, 0.0
    %v381 = vsel %vm377, %v367, 0.0
    %v382 = vsel %vm378, %v370, 0.0
    %383 = vset.pattern.permute.xlu0 6
    %384 = vperm.xlu0 %383, %v172
    %v385 = vpop.permute.xlu0 %384
    %v387 = vmul.f32 %v385, %v379
    %v388 = vmul.f32 %v385, %v380
    %v389 = vmul.f32 %v385, %v381
    %v390 = vmul.f32 %v385, %v382
    %v391 = vadd.f32 %v354, %v387
    %v392 = vadd.f32 %v355, %v388
    %v393 = vadd.f32 %v356, %v389
    %v394 = vadd.f32 %v357, %v390
    %395 = vrot.lane.b32.xlu0 %v151, 112
    %v396 = vpop.permute.xlu0 %395
    %397 = vrot.lane.b32.xlu0 %v152, 112
    %v398 = vpop.permute.xlu0 %397
    %399 = vrot.lane.b32.xlu0 %v153, 112
    %v400 = vpop.permute.xlu0 %399
    %401 = vrot.lane.b32.xlu0 %v154, 112
    %v402 = vpop.permute.xlu0 %401
    %vm403 = vcmp.lt.s32.totalorder %v156, 112
    %v404 = vsel %vm403, %v400, %v402
    %v405 = vsel %vm403, %v398, %v400
    %v406 = vsel %vm403, %v396, %v398
    %v407 = vsel %vm403, %v402, %v396
    %v408 = vsel %vm371, %v406, 0.0
    %v409 = vsel %vm372, %v405, 0.0
    %v410 = vsel %vm373, %v404, 0.0
    %v411 = vsel %vm374, %v407, 0.0
    %412 = vset.pattern.permute.xlu0 7
    %413 = vperm.xlu0 %412, %v172
    %v414 = vpop.permute.xlu0 %413
    %v416 = vmul.f32 %v414, %v408
    %v417 = vmul.f32 %v414, %v409
    %v418 = vmul.f32 %v414, %v410
    %v419 = vmul.f32 %v414, %v411
    %v420 = vadd.f32 %v391, %v416
    %v421 = vadd.f32 %v392, %v417
    %v422 = vadd.f32 %v393, %v418
    %v423 = vadd.f32 %v394, %v419
    %424 = vrot.lane.b32.xlu0 %v151, 111
    %v425 = vpop.permute.xlu0 %424
    %426 = vrot.lane.b32.xlu0 %v152, 111
    %v427 = vpop.permute.xlu0 %426
    %428 = vrot.lane.b32.xlu0 %v153, 111
    %v429 = vpop.permute.xlu0 %428
    %430 = vrot.lane.b32.xlu0 %v154, 111
    %v431 = vpop.permute.xlu0 %430
    %vm432 = vcmp.lt.s32.totalorder %v156, 111
    %v433 = vsel %vm432, %v429, %v431
    %v434 = vsel %vm432, %v427, %v429
    %v435 = vsel %vm432, %v425, %v427
    %v436 = vsel %vm432, %v431, %v425
    %vm437 = vmand %vm371, %vm264
    %vm438 = vmand %vm372, %vm265
    %vm439 = vmand %vm373, %vm266
    %vm440 = vmand %vm374, %vm267
    %v441 = vsel %vm437, %v435, 0.0
    %v442 = vsel %vm438, %v434, 0.0
    %v443 = vsel %vm439, %v433, 0.0
    %v444 = vsel %vm440, %v436, 0.0
    %445 = vset.pattern.permute.xlu0 8
    %446 = vperm.xlu0 %445, %v172
    %v447 = vpop.permute.xlu0 %446
    %v449 = vmul.f32 %v447, %v441
    %v450 = vmul.f32 %v447, %v442
    %v451 = vmul.f32 %v447, %v443
    %v452 = vmul.f32 %v447, %v444
    %v453 = vadd.f32 %v420, %v449
    %v454 = vadd.f32 %v421, %v450
    %v455 = vadd.f32 %v422, %v451
    %v456 = vadd.f32 %v423, %v452
    %s457 = sld [smem:[#allocation2]]
    %s458 = sld [smem:[#allocation2 + $0x1]]
    %s459 = sld [smem:[#allocation2 + $0x2]]
    %v460 = vld [vmem:[%s5] sm:$0x3]
    %v461 = vld [vmem:[%s6] sm:$0x3]
    %463 = vset.pattern.permute.xlu0 0
    %464 = vperm.xlu0 %463, %v461
    %v465 = vpop.permute.xlu0 %464
    %v467 = vadd.f32 %v465, 0.0
    %469 = vset.pattern.permute.xlu0 0
    %470 = vperm.xlu0 %469, %v460
    %v471 = vpop.permute.xlu0 %470
    %v473 = vlaneseq
    %v474 = vshrl.u32 %v473, 7
    %v475 = vsub.s32 0, %v474
    %v476 = vrot.slane %v453, %v475
    %v477 = vlaneseq
    %v478 = vshrl.u32 %v477, 7
    %v479 = vsub.s32 0, %v478
    %v480 = vrot.slane %v454, %v479
    %v481 = vlaneseq
    %v482 = vshrl.u32 %v481, 7
    %v483 = vsub.s32 0, %v482
    %v484 = vrot.slane %v455, %v483
    %v485 = vlaneseq
    %v486 = vshrl.u32 %v485, 7
    %v487 = vsub.s32 0, %v486
    %v488 = vrot.slane %v456, %v487
    %v489 = vmul.f32 %v471, %v476
    %v490 = vmul.f32 %v471, %v480
    %v491 = vmul.f32 %v471, %v484
    %v492 = vmul.f32 %v471, %v488
    %v493 = vadd.f32 %v467, %v489
    %v494 = vadd.f32 %v467, %v490
    %v495 = vadd.f32 %v467, %v491
    %v496 = vadd.f32 %v467, %v492
    %497 = vset.pattern.permute.xlu0 1
    %498 = vperm.xlu0 %497, %v460
    %v499 = vpop.permute.xlu0 %498
    %v501 = vlaneseq
    %v502 = vshrl.u32 %v501, 7
    %v503 = vsub.s32 1, %v502
    %v504 = vrot.slane %v453, %v503
    %v505 = vlaneseq
    %v506 = vshrl.u32 %v505, 7
    %v507 = vsub.s32 1, %v506
    %v508 = vrot.slane %v454, %v507
    %v509 = vlaneseq
    %v510 = vshrl.u32 %v509, 7
    %v511 = vsub.s32 1, %v510
    %v512 = vrot.slane %v455, %v511
    %v513 = vlaneseq
    %v514 = vshrl.u32 %v513, 7
    %v515 = vsub.s32 1, %v514
    %v516 = vrot.slane %v456, %v515
    %v517 = vmul.f32 %v499, %v504
    %v518 = vmul.f32 %v499, %v508
    %v519 = vmul.f32 %v499, %v512
    %v520 = vmul.f32 %v499, %v516
    %v521 = vadd.f32 %v493, %v517
    %v522 = vadd.f32 %v494, %v518
    %v523 = vadd.f32 %v495, %v519
    %v524 = vadd.f32 %v496, %v520
    %v525 = vstv %s457
    %v526 = vmul.f32 %v521, %v525
    %v527 = vmul.f32 %v522, %v525
    %v528 = vmul.f32 %v523, %v525
    %v529 = vmul.f32 %v524, %v525
    %v530 = vmax.f32 %v526, 0.0
    %v531 = vmax.f32 %v527, 0.0
    %v532 = vmax.f32 %v528, 0.0
    %v533 = vmax.f32 %v529, 0.0
    %v534 = vstv %s458
    %v535 = vmul.f32 %v530, %v534
    %v536 = vmul.f32 %v531, %v534
    %v537 = vmul.f32 %v532, %v534
    %v538 = vmul.f32 %v533, %v534
    %v539 = vstv %s459
    %v540 = vadd.f32 %v535, %v539
    %v541 = vadd.f32 %v536, %v539
    %v542 = vadd.f32 %v537, %v539
    %v543 = vadd.f32 %v538, %v539
    %v544 = vlaneseq
    %v545 = vshrl.u32 %v544, 7
    %v546 = vsub.s32 0, %v545
    %v547 = vrot.slane %v42, %v546
    %v548 = vlaneseq
    %v549 = vshrl.u32 %v548, 7
    %v550 = vsub.s32 4, %v549
    %v551 = vrot.slane %v42, %v550
    %v552 = vlaneseq
    %v553 = vshrl.u32 %v552, 7
    %v554 = vsub.s32 0, %v553
    %v555 = vrot.slane %v43, %v554
    %v556 = vlaneseq
    %v557 = vshrl.u32 %v556, 7
    %v558 = vsub.s32 4, %v557
    %v559 = vrot.slane %v43, %v558
    %v568 = vrot.slane %v540, 7
    %v569 = vrot.slane %v541, 7
    %v570 = vrot.slane %v542, 7
    %v571 = vrot.slane %v543, 7
    %v576 = vlaneseq
    %v577 = vshrl.u32 %v576, 7
    %v578 = vsub.s32 1, %v577
    %v579 = vrot.slane %v42, %v578
    %v580 = vlaneseq
    %v581 = vshrl.u32 %v580, 7
    %v582 = vsub.s32 5, %v581
    %v583 = vrot.slane %v42, %v582
    %v584 = vlaneseq
    %v585 = vshrl.u32 %v584, 7
    %v586 = vsub.s32 1, %v585
    %v587 = vrot.slane %v43, %v586
    %v588 = vlaneseq
    %v589 = vshrl.u32 %v588, 7
    %v590 = vsub.s32 5, %v589
    %v591 = vrot.slane %v43, %v590
    %v596 = vrot.slane %v540, 6
    %v597 = vrot.slane %v541, 6
    %v598 = vrot.slane %v542, 6
    %v599 = vrot.slane %v543, 6
    %vm604 = vcmask 1040384
    %v605 = vsel %vm604, %v547, %v568
    %v606 = vsel %vm604, %v551, %v569
    %v607 = vsel %vm604, %v555, %v570
    %v608 = vsel %vm604, %v559, %v571
    %vm609 = vcmask 1041408
    %v610 = vsel %vm609, %v605, %v579
    %v611 = vsel %vm609, %v606, %v583
    %v612 = vsel %vm609, %v607, %v587
    %v613 = vsel %vm609, %v608, %v591
    %vm614 = vcmask 1042432
    %v615 = vsel %vm614, %v610, %v596
    %v616 = vsel %vm614, %v611, %v597
    %v617 = vsel %vm614, %v612, %v598
    %v618 = vsel %vm614, %v613, %v599
    %v623 = vcombine.low %v615, %v616
    %v624 = vcombine.low %v617, %v618
    %627 = vst [vmem:[%s8] sm:$0xff] %v623
    %628 = vst [vmem:[%s8 + $0x8] sm:$0xff] %v624
    // Predicated region
    $region38: #{shuffle_unit_forward.1} parent=1 // pred_check
      _
    $region39: #{shuffle_unit_forward.1} parent=1 // pred_check_branch
      %630 = sbr.rel (0) target = $region41
    $region40: #{shuffle_unit_forward.1} parent=1 // pred_region
      _
    $region41: #{shuffle_unit_forward.1} parent=1 // pred_fallthru
      _
    // Predicated region
    $region42: #{shuffle_unit_forward.1} parent=1 // pred_check
      _
    $region43: #{shuffle_unit_forward.1} parent=1 // pred_check_branch
      %632 = sbr.rel (0) target = $region45
    $region44: #{shuffle_unit_forward.1} parent=1 // pred_region
      _
    $region45: #{shuffle_unit_forward.1} parent=1 // pred_fallthru
      _
    %633 = vsyncpa [#allocation3], 1

</llo_original>
